<compile_context>
chip_gen: v7x
topology: tpu7x:2x2x1
jax: 0.10.0
libtpu: 0.0.40
codegen_flags: <defaults>
</compile_context>

<pallas_src>
import jax
import jax.numpy as jnp
from jax.experimental import pallas as pl
from jax.experimental.pallas import tpu as pltpu


def _round_up(n, m):
    return ((n + m - 1) // m) * m


def _pad_cast_2d(a, rows, cols, dtype):
    """Cast (and zero-pad only if needed) a 2-D array to (rows, cols)."""
    r, c = a.shape
    if (r, c) == (rows, cols):
        return a.astype(dtype)
    return jnp.zeros((rows, cols), dtype).at[:r, :c].set(a.astype(dtype))


def _vmem_limit_bytes(needed_bytes):
    """Generation-aware VMEM cap with compiler-scratch headroom."""
    cap = None
    try:
        info = pltpu.get_tpu_info()
        cap = getattr(info, "vmem_capacity_bytes", None)
    except Exception:
        cap = None
    if not cap:
        cap = 64 * 2 ** 20  # conservative fallback: v7x-sized per-TC VMEM
    ceiling = (cap * 3) // 4  # leave headroom (no full-capacity requests)
    return int(min(ceiling, max(needed_bytes, 32 * 2 ** 20)))


def _make_encoder_kernel(num_layers, d_out_real):
    """Fused MLP kernel over padded feature dims (bf16 hidden activations)."""

    def kernel(*refs):
        # refs = (x_ref, w0, b0, w1, b1, ..., w_{L-1}, b_{L-1}, out_ref)
        x_ref = refs[0]
        out_ref = refs[-1]
        params = refs[1:-1]

        h = x_ref[...]  # bf16 activations straight into the MXU
        for i in range(num_layers):
            w = params[2 * i][...]        # bf16 [D_in_pad, D_out_pad]
            b = params[2 * i + 1][...]    # bf16 (hidden) / f32 (final) [1, D_out_pad]
            # MXU: bf16 operands, f32 accumulation.
            acc = jnp.dot(h, w, preferred_element_type=jnp.float32)
            if i != num_layers - 1:
                # bias-add + ReLU in bf16 (bf16 VALU on v6e/v7x; widened on v5e).
                h = jnp.maximum(acc.astype(jnp.bfloat16) + b, 0)
            else:
                # TODO(synk): Dropout(p=0.5) is identity in eval mode; training-mode
                # masking/scaling with pltpu.prng_random_bits is not implemented.
                logits = acc + b  # f32 bias-add for the final layer
                col = jax.lax.broadcasted_iota(jnp.int32, logits.shape, 1)
                logits = jnp.where(col < d_out_real, logits, -1e30)
                m = jnp.max(logits, axis=-1, keepdims=True)
                e = jnp.exp(logits - m)
                denom = jnp.sum(e, axis=-1, keepdims=True)
                h = e / denom  # exact divide: rows sum to 1 to f32 precision
        out_ref[...] = h.astype(out_ref.dtype)

    return kernel


def prepare_encoder_params(weights, biases):
    """Pad + cast parameters ONCE (hoisted out of the per-call path).

    Args:
      weights: list of [D_in, D_out] float32 arrays (transpose of torch layout).
      biases:  list of [1, D_out] float32 arrays.
    Returns:
      (flat_params, dims, pdims): padded bf16 weights / biases (final bias f32),
      real feature dims, and 128-aligned padded feature dims.
    """
    num_layers = len(weights)
    dims = tuple([weights[0].shape[0]] + [w.shape[1] for w in weights])
    pdims = tuple(_round_up(d, 128) for d in dims)

    flat_params = []
    for li, (w, b) in enumerate(zip(weights, biases)):
        din, dout = w.shape
        last = li == num_layers - 1
        wp = jnp.zeros((pdims[li], pdims[li + 1]), jnp.bfloat16)
        wp = wp.at[:din, :dout].set(w.astype(jnp.bfloat16))
        b_dt = jnp.float32 if last else jnp.bfloat16
        bp = jnp.zeros((1, pdims[li + 1]), b_dt)
        bp = bp.at[:, :dout].set(b.astype(b_dt).reshape(1, dout))
        flat_params.extend([wp, bp])
    return tuple(flat_params), dims, pdims


def encoder_forward(x, flat_params, dims, pdims, *, tile_b=256):
    """Run the fused Encoder forward pass.

    Args:
      x: [B, dims[0]] float32 input.
      flat_params/dims/pdims: output of prepare_encoder_params().
    Returns:
      [B, dims[-1]] float32 softmax probabilities over dim 1.
    """
    num_layers = len(dims) - 1
    B = x.shape[0]
    d_out = dims[-1]

    ROW = 16  # bf16 second-minor tile (sublane-packed rows)
    B_pad = _round_up(max(B, 1), ROW)
    # TB: largest multiple of ROW dividing B_pad, no bigger than requested /
    # the real padded batch (no 8 -> 128 over-padding).
    TB = min(B_pad, _round_up(tile_b, ROW))
    while B_pad % TB:
        TB -= ROW
    # v7x megacore: prefer >= 2 "parallel" grid steps when the batch allows it.
    if B_pad // TB < 2 and B_pad % (2 * ROW) == 0:
        TB = B_pad // 2

    # Input tile in bf16 (halves the per-step activation DMA); pad is a no-op
    # copy when the batch/feature dims are already aligned.
    xp = _pad_cast_2d(x, B_pad, pdims[0], jnp.bfloat16)

    in_specs = [pl.BlockSpec((TB, pdims[0]), lambda i: (i, 0))]
    for p in flat_params:
        # Constant index_map + single buffering: params are fetched once and
        # stay VMEM-resident (no pointless double buffer).
        in_specs.append(
            pl.BlockSpec(p.shape, lambda i: (0, 0), pipeline_mode=pl.Buffered(1))
        )
    out_spec = pl.BlockSpec((TB, pdims[-1]), lambda i: (i, 0))
    grid = (B_pad // TB,)

    # Cost hint for XLA scheduling around the custom call.
    flops = 2 * B_pad * sum(pdims[i] * pdims[i + 1] for i in range(num_layers))
    transcendentals = B_pad * pdims[-1]  # exp in the softmax
    param_bytes = sum(int(p.size) * p.dtype.itemsize for p in flat_params)
    bytes_accessed = int(xp.size) * 2 + param_bytes + B_pad * pdims[-1] * 4
    cost = pl.CostEstimate(flops=flops, transcendentals=transcendentals,
                           bytes_accessed=bytes_accessed)

    # VMEM budget: double-buffered x/out tiles + single-buffered params +
    # intermediate activation headroom; capped per-generation with headroom.
    needed = (2 * TB * pdims[0] * 2            # bf16 x tile, double-buffered
              + 2 * TB * pdims[-1] * 4         # f32 out tile, double-buffered
              + param_bytes                    # params (Buffered(1): one copy)
              + 4 * TB * max(pdims) * 4)       # intermediate activations
    vmem_limit = _vmem_limit_bytes(needed)

    kernel = _make_encoder_kernel(num_layers, d_out)

    fn = pl.pallas_call(
        kernel,
        out_shape=jax.ShapeDtypeStruct((B_pad, pdims[-1]), jnp.float32),
        grid=grid,
        in_specs=in_specs,
        out_specs=out_spec,
        compiler_params=pltpu.CompilerParams(
            dimension_semantics=("parallel",),
            vmem_limit_bytes=vmem_limit,
        ),
        cost_estimate=cost,
    )
    out_padded = fn(xp, *flat_params)
    return out_padded[:B, :d_out]


def init_encoder_params(dims, key):
    """Deterministic PyTorch-style (uniform fan-in) Linear init."""
    weights, biases = [], []
    for i in range(len(dims) - 1):
        d_in, d_out = dims[i], dims[i + 1]
        key, kw, kb = jax.random.split(key, 3)
        bound = 1.0 / (d_in ** 0.5)
        # Stored as [D_in, D_out] (transpose of torch's [out, in]).
        w = jax.random.uniform(kw, (d_in, d_out), jnp.float32, -bound, bound)
        b = jax.random.uniform(kb, (1, d_out), jnp.float32, -bound, bound)
        weights.append(w)
        biases.append(b)
    return weights, biases


def encoder_reference(x, weights, biases):
    """Pure-JAX f32 reference matching PyTorch eval-mode semantics."""
    h = x
    n = len(weights)
    for i, (w, b) in enumerate(zip(weights, biases)):
        h = h @ w + b
        if i != n - 1:
            h = jnp.maximum(h, 0.0)
        else:
            h = jax.nn.softmax(h, axis=1)  # nn.Softmax() -> dim=1 for 2-D input
    return h


if __name__ == "__main__":
    dims = [32, 64, 16]   # Encoder(dims): Linear(32,64)+ReLU, Linear(64,16)+Dropout+Softmax
    B = 8

    key = jax.random.PRNGKey(0)
    key, kx = jax.random.split(key)
    x = jax.random.normal(kx, (B, dims[0]), jnp.float32)

    weights, biases = init_encoder_params(dims, key)

    # Padded / bf16-cast parameters are prepared ONCE (not per forward call).
    flat_params, dims_t, pdims = prepare_encoder_params(weights, biases)

    out = encoder_forward(x, flat_params, dims_t, pdims)
    out = jax.block_until_ready(out)

    ref = encoder_reference(x, weights, biases)
    assert out.shape == (B, dims[-1])
    # bf16 matmul operands / activations => looser tolerance than pure f32.
    assert jnp.allclose(out, ref, atol=2e-2, rtol=2e-2), "mismatch vs reference"
    # exact divide in the softmax: rows sum to 1 to f32 precision
    assert jnp.allclose(jnp.sum(out, axis=1), jnp.ones((B,)), atol=1e-3)

    print("KERNEL_OK")
</pallas_src>

<mosaic_0001>
module attributes {stable_mosaic.version = 11 : i64} {
  func.func @kernel(%arg0: i32, %arg1: memref<16x128xbf16, #tpu.memory_space<vmem>>, %arg2: memref<128x128xbf16, #tpu.memory_space<vmem>>, %arg3: memref<1x128xbf16, #tpu.memory_space<vmem>>, %arg4: memref<128x128xbf16, #tpu.memory_space<vmem>>, %arg5: memref<1x128xf32, #tpu.memory_space<vmem>>, %arg6: memref<16x128xf32, #tpu.memory_space<vmem>>) attributes {dimension_semantics = [#tpu.dimension_semantics<parallel>], iteration_bounds = array<i64: 1>, scalar_prefetch = 0 : i64, scratch_operands = 0 : i64, tpu.core_type = #tpu.core_type<tc>, window_params = [{transform_indices = @transform_0, window_bounds = array<i64: 16, 128>}, {pipeline_mode = #tpu.pipeline_mode<synchronous>, transform_indices = @transform_1, window_bounds = array<i64: 128, 128>}, {pipeline_mode = #tpu.pipeline_mode<synchronous>, transform_indices = @transform_2, window_bounds = array<i64: 1, 128>}, {pipeline_mode = #tpu.pipeline_mode<synchronous>, transform_indices = @transform_3, window_bounds = array<i64: 128, 128>}, {pipeline_mode = #tpu.pipeline_mode<synchronous>, transform_indices = @transform_4, window_bounds = array<i64: 1, 128>}, {transform_indices = @transform_5, window_bounds = array<i64: 16, 128>}]} {
    %c0 = arith.constant 0 : index
    %c0_0 = arith.constant 0 : index
    %0 = vector.load %arg1[%c0, %c0_0] : memref<16x128xbf16, #tpu.memory_space<vmem>>, vector<16x128xbf16>
    %c0_1 = arith.constant 0 : index
    %c0_2 = arith.constant 0 : index
    %1 = vector.load %arg2[%c0_1, %c0_2] : memref<128x128xbf16, #tpu.memory_space<vmem>>, vector<128x128xbf16>
    %c0_3 = arith.constant 0 : index
    %c0_4 = arith.constant 0 : index
    %2 = vector.load %arg3[%c0_3, %c0_4] : memref<1x128xbf16, #tpu.memory_space<vmem>>, vector<1x128xbf16>
    %cst = arith.constant dense<0.000000e+00> : vector<16x128xf32>
    %3 = tpu.matmul %0, %1, %cst {dimension_numbers = #tpu.dot_dimension_numbers<[1], [0], [0], [1], [0, 0, 1, 1], [], []>} : vector<16x128xbf16>, vector<128x128xbf16>, vector<16x128xf32> -> vector<16x128xf32>
    %4 = arith.truncf %3 : vector<16x128xf32> to vector<16x128xbf16>
    %5 = vector.broadcast %2 : vector<1x128xbf16> to vector<16x128xbf16>
    %6 = arith.addf %4, %5 : vector<16x128xbf16>
    %cst_5 = arith.constant 0.000000e+00 : bf16
    %7 = vector.broadcast %cst_5 : bf16 to vector<16x128xbf16>
    %8 = arith.maximumf %6, %7 : vector<16x128xbf16>
    %c0_6 = arith.constant 0 : index
    %c0_7 = arith.constant 0 : index
    %9 = vector.load %arg4[%c0_6, %c0_7] : memref<128x128xbf16, #tpu.memory_space<vmem>>, vector<128x128xbf16>
    %c0_8 = arith.constant 0 : index
    %c0_9 = arith.constant 0 : index
    %10 = vector.load %arg5[%c0_8, %c0_9] : memref<1x128xf32, #tpu.memory_space<vmem>>, vector<1x128xf32>
    %cst_10 = arith.constant dense<0.000000e+00> : vector<16x128xf32>
    %11 = tpu.matmul %8, %9, %cst_10 {dimension_numbers = #tpu.dot_dimension_numbers<[1], [0], [0], [1], [0, 0, 1, 1], [], []>} : vector<16x128xbf16>, vector<128x128xbf16>, vector<16x128xf32> -> vector<16x128xf32>
    %12 = vector.broadcast %10 : vector<1x128xf32> to vector<16x128xf32>
    %13 = arith.addf %11, %12 : vector<16x128xf32>
    %14 = tpu.iota {dimensions = array<i32: 1>} : vector<16x128xi32>
    %c16_i32 = arith.constant 16 : i32
    %15 = vector.broadcast %c16_i32 : i32 to vector<16x128xi32>
    %16 = arith.cmpi slt, %14, %15 : vector<16x128xi32>
    %cst_11 = arith.constant -1.000000e+30 : f32
    %17 = vector.broadcast %cst_11 : f32 to vector<16x128xf32>
    %18 = arith.select %16, %13, %17 : vector<16x128xi1>, vector<16x128xf32>
    %cst_12 = arith.constant dense<0xFF800000> : vector<16xf32>
    %19 = vector.multi_reduction <maximumf>, %18, %cst_12 [1] : vector<16x128xf32> to vector<16xf32>
    %20 = vector.shape_cast %19 : vector<16xf32> to vector<16x1xf32>
    %21 = vector.broadcast %20 : vector<16x1xf32> to vector<16x128xf32>
    %22 = arith.subf %18, %21 : vector<16x128xf32>
    %23 = math.exp %22 : vector<16x128xf32>
    %cst_13 = arith.constant dense<0.000000e+00> : vector<16xf32>
    %24 = vector.multi_reduction <add>, %23, %cst_13 [1] : vector<16x128xf32> to vector<16xf32>
    %25 = vector.shape_cast %24 : vector<16xf32> to vector<16x1xf32>
    %26 = vector.broadcast %25 : vector<16x1xf32> to vector<16x128xf32>
    %27 = arith.divf %23, %26 : vector<16x128xf32>
    %c0_14 = arith.constant 0 : index
    %c0_15 = arith.constant 0 : index
    %28 = vector.load %arg6[%c0_14, %c0_15] : memref<16x128xf32, #tpu.memory_space<vmem>>, vector<16x128xf32>
    tpu.vector_store %arg6[%c0_14, %c0_15], %27 {strides = array<i32>} : memref<16x128xf32, #tpu.memory_space<vmem>>, vector<16x128xf32>,
    return
  }
  func.func @transform_0(%arg0: i32) -> (i32, i32) {
    %c0_i32 = arith.constant 0 : i32
    %c0_i32_0 = arith.constant 0 : i32
    return %arg0, %c0_i32 : i32, i32
  }
  func.func @transform_1(%arg0: i32) -> (i32, i32) {
    %c0_i32 = arith.constant 0 : i32
    %c0_i32_0 = arith.constant 0 : i32
    %c0_i32_1 = arith.constant 0 : i32
    return %c0_i32, %c0_i32_0 : i32, i32
  }
  func.func @transform_2(%arg0: i32) -> (i32, i32) {
    %c0_i32 = arith.constant 0 : i32
    %c0_i32_0 = arith.constant 0 : i32
    %c0_i32_1 = arith.constant 0 : i32
    return %c0_i32, %c0_i32_0 : i32, i32
  }
  func.func @transform_3(%arg0: i32) -> (i32, i32) {
    %c0_i32 = arith.constant 0 : i32
    %c0_i32_0 = arith.constant 0 : i32
    %c0_i32_1 = arith.constant 0 : i32
    return %c0_i32, %c0_i32_0 : i32, i32
  }
  func.func @transform_4(%arg0: i32) -> (i32, i32) {
    %c0_i32 = arith.constant 0 : i32
    %c0_i32_0 = arith.constant 0 : i32
    %c0_i32_1 = arith.constant 0 : i32
    return %c0_i32, %c0_i32_0 : i32, i32
  }
  func.func @transform_5(%arg0: i32) -> (i32, i32) {
    %c0_i32 = arith.constant 0 : i32
    %c0_i32_0 = arith.constant 0 : i32
    return %arg0, %c0_i32 : i32, i32
  }
}

</mosaic_0001>

<llo_original>
// kernel: tpu_custom_call.1
$region0: #{tpu_custom_call.1}
  #allocation0 [shape = 'u32[]', space=smem, size = 0x4, offset = 0x4, fixed_abs, tag = 'smem constant byte address 0x4 - core index']
  #allocation1 [shape = 'u32[144,128]{1,0:T(1,128)}', space=vmem, size = 0x12000, scoped, tag = 'internal scratch']
  %s0 = inlined_call_operand.hbm [shape: bf16[16,128], index: 0, kind: input, shape index: {}]
  %s1 = inlined_call_operand.hbm [shape: bf16[128,128], index: 1, kind: input, shape index: {}]
  %s2 = inlined_call_operand.vmem [shape: bf16[1,128], index: 2, kind: input, shape index: {}]
  %s3 = inlined_call_operand.hbm [shape: bf16[128,128], index: 3, kind: input, shape index: {}]
  %s4 = inlined_call_operand.vmem [shape: f32[1,128], index: 4, kind: input, shape index: {}]
  %s5 = inlined_call_operand.hbm [shape: f32[16,128], index: 5, kind: output, shape index: {}]
  %s6 = sld [smem:[#allocation0]]
  $region42: #{tpu_custom_call.1} parent=0
    _
  %s8 = ssub.s32 1, %s6
  %s9 = scalar_select 0, %s8, %s6
  $region1: #{tpu_custom_call.1} parent=0
    #allocation2 [shape = 'u8[4096]{0}', space=vmem, size = 0x1000, scoped, tag = 'input window, operand 0, single buffered']
    #allocation3 [shape = 's32[1]{0}', space=sflag, size = 0x4, scoped, tag = 'scoped memory for tpu_custom_call.1']
    #allocation4 [shape = 's32[1]{0}', space=sflag, size = 0x4, scoped, tag = 'scoped memory for tpu_custom_call.1']
    #allocation5 [shape = 'u8[32768]{0}', space=vmem, size = 0x8000, scoped, tag = 'input window, operand 1, single buffered']
    #allocation6 [shape = 's32[1]{0}', space=sflag, size = 0x4, scoped, tag = 'scoped memory for tpu_custom_call.1']
    #allocation7 [shape = 'u8[32768]{0}', space=vmem, size = 0x8000, scoped, tag = 'input window, operand 3, single buffered']
    #allocation8 [shape = 'u8[8192]{0}', space=vmem, size = 0x2000, scoped, tag = 'output window, operand 0, single buffered']
    %10 = vsyncpa [#allocation3], 0
    %11 = vsyncpa [#allocation6], 0
    %12 = vsyncpa [#allocation4], 0
    // Predicated region
    $region2: #{tpu_custom_call.1} parent=1 // pred_check
      _
    $region3: #{tpu_custom_call.1} parent=1 // pred_check_branch
      %14 = sbr.rel (0) target = $region5
    $region4: #{tpu_custom_call.1} parent=1 // pred_region
      %s16 = ssub.s32 128, 128
      %17 = vsyncadd [#allocation3], %s16
      %s18 = sshll.u32 [#allocation2], 4
      %s19 = int_to_ptr.vmem [resolvable:$true] %s18
      %24 = dma.hbm_to_vmem [thread:$0]  %s0, 128, %s19, [#allocation3], 64, 64, 4
    $region5: #{tpu_custom_call.1} parent=1 // pred_fallthru
      _
    // Predicated region
    $region6: #{tpu_custom_call.1} parent=1 // pred_check
      _
    $region7: #{tpu_custom_call.1} parent=1 // pred_check_branch
      %26 = sbr.rel (0) target = $region9
    $region8: #{tpu_custom_call.1} parent=1 // pred_region
      %s28 = ssub.s32 1024, 1024
      %29 = vsyncadd [#allocation6], %s28
      %s30 = sshll.u32 [#allocation5], 4
      %s31 = int_to_ptr.vmem [resolvable:$true] %s30
      %36 = dma.hbm_to_vmem [thread:$0]  %s1, 1024, %s31, [#allocation6], 64, 64, 4
    $region9: #{tpu_custom_call.1} parent=1 // pred_fallthru
      _
    // Predicated region
    $region10: #{tpu_custom_call.1} parent=1 // pred_check
      _
    $region11: #{tpu_custom_call.1} parent=1 // pred_check_branch
      %38 = sbr.rel (0) target = $region13
    $region12: #{tpu_custom_call.1} parent=1 // pred_region
      _
    $region13: #{tpu_custom_call.1} parent=1 // pred_fallthru
      _
    // Predicated region
    $region14: #{tpu_custom_call.1} parent=1 // pred_check
      _
    $region15: #{tpu_custom_call.1} parent=1 // pred_check_branch
      %40 = sbr.rel (0) target = $region17
    $region16: #{tpu_custom_call.1} parent=1 // pred_region
      %s42 = ssub.s32 1024, 1024
      %43 = vsyncadd [#allocation6], %s42
      %s44 = sshll.u32 [#allocation7], 4
      %s45 = int_to_ptr.vmem [resolvable:$true] %s44
      %50 = dma.hbm_to_vmem [thread:$0]  %s3, 1024, %s45, [#allocation6], 64, 64, 4
    $region17: #{tpu_custom_call.1} parent=1 // pred_fallthru
      _
    // Predicated region
    $region18: #{tpu_custom_call.1} parent=1 // pred_check
      _
    $region19: #{tpu_custom_call.1} parent=1 // pred_check_branch
      %52 = sbr.rel (0) target = $region21
    $region20: #{tpu_custom_call.1} parent=1 // pred_region
      _
    $region21: #{tpu_custom_call.1} parent=1 // pred_fallthru
      _
    // Predicated region
    $region22: #{tpu_custom_call.1} parent=1 // pred_check
      _
    $region23: #{tpu_custom_call.1} parent=1 // pred_check_branch
      %54 = sbr.rel (0) target = $region25
    $region24: #{tpu_custom_call.1} parent=1 // pred_region
      %55 = dma.done [#allocation3], 128
    $region25: #{tpu_custom_call.1} parent=1 // pred_fallthru
      _
    // Predicated region
    $region26: #{tpu_custom_call.1} parent=1 // pred_check
      _
    $region27: #{tpu_custom_call.1} parent=1 // pred_check_branch
      %57 = sbr.rel (0) target = $region29
    $region28: #{tpu_custom_call.1} parent=1 // pred_region
      %58 = dma.done [#allocation6], 1024
    $region29: #{tpu_custom_call.1} parent=1 // pred_fallthru
      _
    // Predicated region
    $region30: #{tpu_custom_call.1} parent=1 // pred_check
      _
    $region31: #{tpu_custom_call.1} parent=1 // pred_check_branch
      %60 = sbr.rel (0) target = $region33
    $region32: #{tpu_custom_call.1} parent=1 // pred_region
      %61 = dma.done [#allocation6], 1024
    $region33: #{tpu_custom_call.1} parent=1 // pred_fallthru
      _
    %v63 = vld [vmem:[#allocation2] sm:$0xf]
    %v64 = vld [vmem:[#allocation2 + $0x4] sm:$0xf]
    %v65 = vld [vmem:[#allocation5] sm:$0xf]
    %v66 = vld [vmem:[#allocation5 + $0x4] sm:$0xf]
    %v67 = vld [vmem:[#allocation5 + $0x8] sm:$0xf]
    %v68 = vld [vmem:[#allocation5 + $0xc] sm:$0xf]
    %v69 = vld [vmem:[#allocation5 + $0x10] sm:$0xf]
    %v70 = vld [vmem:[#allocation5 + $0x14] sm:$0xf]
    %v71 = vld [vmem:[#allocation5 + $0x18] sm:$0xf]
    %v72 = vld [vmem:[#allocation5 + $0x1c] sm:$0xf]
    %v73 = vld [vmem:[#allocation5 + $0x20] sm:$0xf]
    %v74 = vld [vmem:[#allocation5 + $0x24] sm:$0xf]
    %v75 = vld [vmem:[#allocation5 + $0x28] sm:$0xf]
    %v76 = vld [vmem:[#allocation5 + $0x2c] sm:$0xf]
    %v77 = vld [vmem:[#allocation5 + $0x30] sm:$0xf]
    %v78 = vld [vmem:[#allocation5 + $0x34] sm:$0xf]
    %v79 = vld [vmem:[#allocation5 + $0x38] sm:$0xf]
    %v80 = vld [vmem:[#allocation5 + $0x3c] sm:$0xf]
    %v81 = vld [vmem:[%s2] sm:$0x1]
    %v84 = vunpack.c.l.b16 %v63
    %v85 = vunpack.c.l.b16 %v64
    %v86 = vpack.c.b16 %v85, %v84
    %v104 = vunpack.c.l.b16 %v65
    %v105 = vunpack.c.l.b16 %v66
    %v106 = vunpack.c.l.b16 %v67
    %v107 = vunpack.c.l.b16 %v68
    %v108 = vunpack.c.l.b16 %v69
    %v109 = vunpack.c.l.b16 %v70
    %v110 = vunpack.c.l.b16 %v71
    %v111 = vunpack.c.l.b16 %v72
    %v112 = vunpack.c.l.b16 %v73
    %v113 = vunpack.c.l.b16 %v74
    %v114 = vunpack.c.l.b16 %v75
    %v115 = vunpack.c.l.b16 %v76
    %v116 = vunpack.c.l.b16 %v77
    %v117 = vunpack.c.l.b16 %v78
    %v118 = vunpack.c.l.b16 %v79
    %v119 = vunpack.c.l.b16 %v80
    %v120 = vpack.c.b16 %v105, %v104
    %v121 = vpack.c.b16 %v107, %v106
    %v122 = vpack.c.b16 %v109, %v108
    %v123 = vpack.c.b16 %v111, %v110
    %v124 = vpack.c.b16 %v113, %v112
    %v125 = vpack.c.b16 %v115, %v114
    %v126 = vpack.c.b16 %v117, %v116
    %v127 = vpack.c.b16 %v119, %v118
    %136 = vmatprep.subr.bf16.mxu0 0
    %137 = vmatpush1.bf16.msra.mxu0 %v120
    %138 = vmatprep.subr.bf16.mxu0 0
    %139 = vmatpush1.bf16.msra.mxu0 %v121
    %140 = vmatprep.subr.bf16.mxu0 0
    %141 = vmatpush1.bf16.msra.mxu0 %v122
    %142 = vmatprep.subr.bf16.mxu0 0
    %143 = vmatpush1.bf16.msra.mxu0 %v123
    %144 = vmatprep.subr.bf16.mxu0 0
    %145 = vmatpush1.bf16.msra.mxu0 %v124
    %146 = vmatprep.subr.bf16.mxu0 0
    %147 = vmatpush1.bf16.msra.mxu0 %v125
    %148 = vmatprep.subr.bf16.mxu0 0
    %149 = vmatpush1.bf16.msra.mxu0 %v126
    %150 = vmatprep.subr.bf16.mxu0 0
    %151 = vmatpush1.bf16.msra.mxu0 %v127
    %152 = vmatprep.subr.bf16.mxu0 0
    %153 = vmatpush1.bf16.msra.mxu0 0
    %154 = vmatprep.subr.bf16.mxu0 0
    %155 = vmatpush1.bf16.msra.mxu0 0
    %156 = vmatprep.subr.bf16.mxu0 0
    %157 = vmatpush1.bf16.msra.mxu0 0
    %158 = vmatprep.subr.bf16.mxu0 0
    %159 = vmatpush1.bf16.msra.mxu0 0
    %160 = vmatprep.subr.bf16.mxu0 0
    %161 = vmatpush1.bf16.msra.mxu0 0
    %162 = vmatprep.subr.bf16.mxu0 0
    %163 = vmatpush1.bf16.msra.mxu0 0
    %164 = vmatprep.subr.bf16.mxu0 0
    %165 = vmatpush1.bf16.msra.mxu0 0
    %166 = vmatprep.subr.bf16.mxu0 0
    %167 = vmatpush1.bf16.msra.mxu0 0
    %168 = vmatprep.mubr.bf16.mxu0 0
    %169 = vmatmul.mubr.bf16.gmra.mrb[0].mxu0 %v86
    %v170 = vpop.f32.mrb[0].mxu0
    %v171 = vadd.f32 0.0, %v170
    %v172 = vpop.f32.mrb[0].mxu0
    %v173 = vpop.f32.mrb[0].mxu0
    %v174 = vadd.f32 0.0, %v173
    %v175 = vpop.f32.mrb[0].mxu0
    %176 = vdwg.mxu0
    %v177 = vpack.c.bf16 %v174, %v171
    %v179 = vpack.i.b16 %v81, %v81
    %v181 = vlaneseq
    %v182 = vshrl.u32 %v181, 7
    %v183 = vsub.s32 0, %v182
    %v184 = vrot.slane %v179, %v183
    %v185 = vadd.bf16 %v177, %v184
    %v186 = vmax.bf16 %v185, 0
    %v187 = vld [vmem:[#allocation7] sm:$0xf]
    %v188 = vld [vmem:[#allocation7 + $0x4] sm:$0xf]
    %v189 = vld [vmem:[#allocation7 + $0x8] sm:$0xf]
    %v190 = vld [vmem:[#allocation7 + $0xc] sm:$0xf]
    %v191 = vld [vmem:[#allocation7 + $0x10] sm:$0xf]
    %v192 = vld [vmem:[#allocation7 + $0x14] sm:$0xf]
    %v193 = vld [vmem:[#allocation7 + $0x18] sm:$0xf]
    %v194 = vld [vmem:[#allocation7 + $0x1c] sm:$0xf]
    %v195 = vld [vmem:[#allocation7 + $0x20] sm:$0xf]
    %v196 = vld [vmem:[#allocation7 + $0x24] sm:$0xf]
    %v197 = vld [vmem:[#allocation7 + $0x28] sm:$0xf]
    %v198 = vld [vmem:[#allocation7 + $0x2c] sm:$0xf]
    %v199 = vld [vmem:[#allocation7 + $0x30] sm:$0xf]
    %v200 = vld [vmem:[#allocation7 + $0x34] sm:$0xf]
    %v201 = vld [vmem:[#allocation7 + $0x38] sm:$0xf]
    %v202 = vld [vmem:[#allocation7 + $0x3c] sm:$0xf]
    %v203 = vld [vmem:[%s4] sm:$0x1]
    %v205 = vlaneseq
    %v206 = vshrl.u32 %v205, 7
    %v207 = vsub.s32 0, %v206
    %v208 = vrot.slane %v203, %v207
    %v226 = vunpack.c.l.b16 %v187
    %v227 = vunpack.c.l.b16 %v188
    %v228 = vunpack.c.l.b16 %v189
    %v229 = vunpack.c.l.b16 %v190
    %v230 = vunpack.c.l.b16 %v191
    %v231 = vunpack.c.l.b16 %v192
    %v232 = vunpack.c.l.b16 %v193
    %v233 = vunpack.c.l.b16 %v194
    %v234 = vunpack.c.l.b16 %v195
    %v235 = vunpack.c.l.b16 %v196
    %v236 = vunpack.c.l.b16 %v197
    %v237 = vunpack.c.l.b16 %v198
    %v238 = vunpack.c.l.b16 %v199
    %v239 = vunpack.c.l.b16 %v200
    %v240 = vunpack.c.l.b16 %v201
    %v241 = vunpack.c.l.b16 %v202
    %v242 = vpack.c.b16 %v227, %v226
    %v243 = vpack.c.b16 %v229, %v228
    %v244 = vpack.c.b16 %v231, %v230
    %v245 = vpack.c.b16 %v233, %v232
    %v246 = vpack.c.b16 %v235, %v234
    %v247 = vpack.c.b16 %v237, %v236
    %v248 = vpack.c.b16 %v239, %v238
    %v249 = vpack.c.b16 %v241, %v240
    %258 = vmatprep.subr.bf16.mxu0 0
    %259 = vmatpush1.bf16.msra.mxu0 %v242
    %260 = vmatprep.subr.bf16.mxu0 0
    %261 = vmatpush1.bf16.msra.mxu0 %v243
    %262 = vmatprep.subr.bf16.mxu0 0
    %263 = vmatpush1.bf16.msra.mxu0 %v244
    %264 = vmatprep.subr.bf16.mxu0 0
    %265 = vmatpush1.bf16.msra.mxu0 %v245
    %266 = vmatprep.subr.bf16.mxu0 0
    %267 = vmatpush1.bf16.msra.mxu0 %v246
    %268 = vmatprep.subr.bf16.mxu0 0
    %269 = vmatpush1.bf16.msra.mxu0 %v247
    %270 = vmatprep.subr.bf16.mxu0 0
    %271 = vmatpush1.bf16.msra.mxu0 %v248
    %272 = vmatprep.subr.bf16.mxu0 0
    %273 = vmatpush1.bf16.msra.mxu0 %v249
    %274 = vmatprep.subr.bf16.mxu0 0
    %275 = vmatpush1.bf16.msra.mxu0 0
    %276 = vmatprep.subr.bf16.mxu0 0
    %277 = vmatpush1.bf16.msra.mxu0 0
    %278 = vmatprep.subr.bf16.mxu0 0
    %279 = vmatpush1.bf16.msra.mxu0 0
    %280 = vmatprep.subr.bf16.mxu0 0
    %281 = vmatpush1.bf16.msra.mxu0 0
    %282 = vmatprep.subr.bf16.mxu0 0
    %283 = vmatpush1.bf16.msra.mxu0 0
    %284 = vmatprep.subr.bf16.mxu0 0
    %285 = vmatpush1.bf16.msra.mxu0 0
    %286 = vmatprep.subr.bf16.mxu0 0
    %287 = vmatpush1.bf16.msra.mxu0 0
    %288 = vmatprep.subr.bf16.mxu0 0
    %289 = vmatpush1.bf16.msra.mxu0 0
    %290 = vmatprep.mubr.bf16.mxu0 0
    %291 = vmatmul.mubr.bf16.gmra.mrb[0].mxu0 %v186
    %v292 = vpop.f32.mrb[0].mxu0
    %v293 = vadd.f32 %v208, %v292
    %v294 = vpop.f32.mrb[0].mxu0
    %v295 = vpop.f32.mrb[0].mxu0
    %v296 = vadd.f32 %v208, %v295
    %v297 = vpop.f32.mrb[0].mxu0
    %298 = vdwg.mxu0
    %v299 = vlaneseq
    %v300 = vand.u32 %v299, 127
    %vm301 = vcmp.lt.s32.totalorder %v300, 16
    %v302 = vsel %vm301, %v293, -1e+30
    %v303 = vsel %vm301, %v296, -1e+30
    %304 = vmax.xlane.f32.xlu0 %v302
    %v305 = vpop.xlane.xlu0 %304
    %306 = vmax.xlane.f32.xlu0 %v303
    %v307 = vpop.xlane.xlu0 %306
    %v308 = vsub.f32 %v302, %v305
    %v309 = vsub.f32 %v303, %v307
    %v310 = vmul.f32 %v308, 1.442695
    %v311 = vpow.pop %v310
    %v312 = vmul.f32 %v309, 1.442695
    %v313 = vpow.pop %v312
    %314 = vadd.xlane.f32.xlu0 %v311
    %v315 = vpop.xlane.xlu0 %314
    %316 = vadd.xlane.f32.xlu0 %v313
    %v317 = vpop.xlane.xlu0 %316
    %v318 = vrcp.pop %v315
    %v319 = vmul.f32 %v311, %v318
    %v320 = vrcp.pop %v317
    %v321 = vmul.f32 %v313, %v320
    %322 = vst [vmem:[#allocation8] sm:$0xff] %v319
    %323 = vst [vmem:[#allocation8 + $0x8] sm:$0xff] %v321
    // Predicated region
    $region34: #{tpu_custom_call.1} parent=1 // pred_check
      _
    $region35: #{tpu_custom_call.1} parent=1 // pred_check_branch
      %325 = sbr.rel (0) target = $region37
    $region36: #{tpu_custom_call.1} parent=1 // pred_region
      %s327 = ssub.s32 256, 256
      %328 = vsyncadd [#allocation4], %s327
      %s329 = sshll.u32 [#allocation8], 4
      %s330 = int_to_ptr.vmem [resolvable:$true] %s329
      %335 = dma.vmem_to_hbm [thread:$0]  %s330, 256, %s5, [#allocation4], 128, 128, 8
    $region37: #{tpu_custom_call.1} parent=1 // pred_fallthru
      _
    // Predicated region
    $region38: #{tpu_custom_call.1} parent=1 // pred_check
      _
    $region39: #{tpu_custom_call.1} parent=1 // pred_check_branch
      %337 = sbr.rel (0) target = $region41
    $region40: #{tpu_custom_call.1} parent=1 // pred_region
      %338 = dma.done [#allocation4], 256
    $region41: #{tpu_custom_call.1} parent=1 // pred_fallthru
      _
    %339 = vsyncpa [#allocation3], 1
    %340 = vsyncpa [#allocation6], 1
    %341 = vsyncpa [#allocation4], 1

</llo_original>
